<compile_context>
chip_gen: v6e
topology: v6e:2x2x1
jax: 0.10.0
libtpu: 0.0.40
codegen_flags: <defaults>
</compile_context>

<pallas_src>
import jax
import jax.numpy as jnp
from jax.experimental import pallas as pl
from jax.experimental.pallas import tpu as pltpu


_VPU_AGG_MAX_N = 16   # below this the 128/256-wide MXU is hopelessly starved


# --------------------------------------------------------------------------- #
# Kernel
# --------------------------------------------------------------------------- #
def _make_gcn_kernel(project_first, vpu_agg, flat_out):
    def kernel(x_ref, adj_ref, dinv_full_ref, dinv_row_ref, w_ref, b_ref, o_ref):
        # Block shapes per grid step (g = batch tile, r = adjacency row tile):
        #   x_ref:         (Bt, N,  F_in)
        #   adj_ref:       (Bt, Nr, N)      (bf16 or f32 storage)
        #   dinv_full_ref: (Bt, N,  1)      f32 diagonal of D^{-1/2}
        #   dinv_row_ref:  (Bt, Nr, 1)      f32 row slice of the same
        #   w_ref:         (F_in, F_out)
        #   b_ref:         (1, F_out)       f32
        #   o_ref:         (Bt, Nr, F_out)  or (Bt, Nr*F_out) when flat_out
        bt, nr, n = adj_ref.shape
        f_in = x_ref.shape[-1]
        f_out = w_ref.shape[-1]

        # All in-kernel math in f32 (bf16 is only an HBM/VMEM storage format;
        # 0/1/2 adjacency entries upcast exactly, v5e has no bf16 VPU).
        adj = adj_ref[...].astype(jnp.float32)
        dinv_full = dinv_full_ref[...]
        dinv_row = dinv_row_ref[...]
        w = w_ref[...].astype(jnp.float32)
        b = b_ref[...]

        def aggregate(a, h):
            # a: (Bt, Nr, N) f32, h: (Bt, N, F) f32 -> (Bt, Nr, F) f32
            if vpu_agg:
                # Small N: an unrolled VPU broadcast-FMA over adjacency columns
                # instead of Bt tiny MXU-starved matmuls.
                acc = a[:, :, 0:1] * h[:, 0:1, :]
                for j in range(1, n):
                    acc = acc + a[:, :, j:j + 1] * h[:, j:j + 1, :]
                return acc
            return jnp.einsum("bij,bjf->bif", a, h,
                              preferred_element_type=jnp.float32)

        if project_first:
            # out = D^{-1/2} (A_tilde (D^{-1/2} (X W))) + b       (Nr == N here)
            x2 = x_ref[...].astype(jnp.float32).reshape(bt * n, f_in)
            h = jnp.dot(x2, w, preferred_element_type=jnp.float32)
            h = dinv_full * h.reshape(bt, n, f_out)                # VPU scaling
            out = dinv_row * aggregate(adj, h) + b                 # VPU scaling + bias
        else:
            # out = (D^{-1/2} (A_tilde (D^{-1/2} X))) W + b
            xs = dinv_full * x_ref[...].astype(jnp.float32)        # VPU scaling
            agg = dinv_row * aggregate(adj, xs)                    # VPU scaling
            out = (jnp.dot(agg.reshape(bt * nr, f_in), w,
                           preferred_element_type=jnp.float32)
                   .reshape(bt, nr, f_out) + b)

        if flat_out:
            o_ref[...] = out.reshape(bt, nr * f_out).astype(o_ref.dtype)
        else:
            o_ref[...] = out.astype(o_ref.dtype)

    return kernel


# --------------------------------------------------------------------------- #
# Tile / VMEM sizing helpers
# --------------------------------------------------------------------------- #
def _round_up(v, m):
    return ((v + m - 1) // m) * m


def _divisors(n):
    return [d for d in range(1, n + 1) if n % d == 0]


def _vmem_capacity_bytes():
    try:
        info = pltpu.get_tpu_info()
        cap = getattr(info, "vmem_capacity_bytes", None)
        if cap:
            return int(cap)
    except Exception:
        pass
    return 64 * 1024 * 1024   # conservative (v7x-sized) fallback


def _step_bytes(bt, nr, n, f_in, f_out, x_isz, adj_isz, w_isz):
    """Approximate per-grid-step VMEM working set: double-buffered blocks +
    resident weights + in-kernel f32 temporaries (incl. the f32 adjacency copy)."""
    blocks = 2 * (bt * nr * n * adj_isz          # adjacency row tile
                  + bt * n * f_in * x_isz        # features (full rows)
                  + bt * n * 4 + bt * nr * 4     # dinv (f32, full + row view)
                  + bt * nr * f_out * x_isz)     # output tile
    weights = 2 * (f_in * f_out * w_isz + f_out * 4)
    temps = 4 * bt * n * max(f_in, f_out) * 4 + bt * nr * n * 4
    return blocks + weights + temps


def _choose_tiles(B, N, F_in, F_out, x_isz, adj_isz, w_isz, vmem_budget,
                  max_rows=2048, min_steps=4):
    """VMEM-aware tiles: biggest batch tile that fits ~85% of the budget while
    keeping >= min_steps total grid steps (>= 2 per v7x TensorCore) and at most
    ~max_rows node-rows per step; adjacency rows are tiled only if one full
    graph does not fit VMEM."""
    tile_budget = int(0.85 * vmem_budget)

    # Row (adjacency) tile: full graph unless a single graph overflows VMEM.
    nr = N
    if _step_bytes(1, N, N, F_in, F_out, x_isz, adj_isz, w_isz) > tile_budget:
        cands = sorted((d for d in _divisors(N) if d % 8 == 0 and d < N),
                       reverse=True)
        nr = next((d for d in cands
                   if _step_bytes(1, d, N, F_in, F_out, x_isz, adj_isz, w_isz)
                   <= tile_budget),
                  cands[-1] if cands else N)
    row_steps = N // nr

    want_steps = min(min_steps, B * row_steps)
    bt = 1
    for d in sorted(_divisors(B), reverse=True):
        if d > 1 and d * N > max_rows:
            continue
        if (B // d) * row_steps < want_steps:
            continue
        if _step_bytes(d, nr, N, F_in, F_out, x_isz, adj_isz, w_isz) > tile_budget:
            continue
        bt = d
        break
    return bt, nr


# --------------------------------------------------------------------------- #
# Wrappers
# --------------------------------------------------------------------------- #
def gcn_layer(x, adj_tilde, dinv_sqrt_vec, weight_t, bias, *,
              adj_dtype=jnp.bfloat16, batch_tile=None, row_tile=None):
    """GCN propagation + linear projection.

    x:             [B, N, F_in]
    adj_tilde:     [B, N, N]  (A + I)
    dinv_sqrt_vec: [B, N]     diagonal of D^{-1/2}
    weight_t:      [F_in, F_out]  (nn.Linear weight, already transposed)
    bias:          [F_out]
    adj_dtype:     storage dtype for the adjacency HBM stream (bf16 default,
                   exact for 0/1/self-loop entries; pass None to keep as given).
    Returns [B, N, F_out] in x.dtype.
    """
    B, N0, F_in = x.shape
    F_out = weight_t.shape[1]
    assert adj_tilde.shape == (B, N0, N0)
    assert dinv_sqrt_vec.shape == (B, N0)

    if adj_dtype is not None:
        adj_tilde = adj_tilde.astype(adj_dtype)

    # Pad node count to a multiple of 8 so (Bt, N) -> (Bt*N) sublane merges in
    # the kernel are free relayouts. Padded rows/cols are zero and sliced off.
    N = _round_up(N0, 8)
    if N != N0:
        x = jnp.pad(x, ((0, 0), (0, N - N0), (0, 0)))
        adj_tilde = jnp.pad(adj_tilde, ((0, 0), (0, N - N0), (0, N - N0)))
        dinv_sqrt_vec = jnp.pad(dinv_sqrt_vec, ((0, 0), (0, N - N0)))

    # D^{-1/2} and bias stay in f32 regardless of activation dtype (VPU math).
    dinv = dinv_sqrt_vec.reshape(B, N, 1).astype(jnp.float32)
    bias2d = bias.reshape(1, F_out).astype(jnp.float32)

    x_isz = jnp.dtype(x.dtype).itemsize
    adj_isz = jnp.dtype(adj_tilde.dtype).itemsize
    w_isz = jnp.dtype(weight_t.dtype).itemsize

    vmem_cap = _vmem_capacity_bytes()
    budget = int(0.81 * vmem_cap)   # ~104 MiB on 128 MiB parts, ~52 MiB on v7x

    Bt, Nr = _choose_tiles(B, N, F_in, F_out, x_isz, adj_isz, w_isz, budget)
    if batch_tile is not None:
        Bt = int(batch_tile)
    if row_tile is not None:
        Nr = int(row_tile)
    assert B % Bt == 0, "batch must be divisible by the batch tile"
    assert N % Nr == 0 and (Nr % 8 == 0 or Nr == N), "bad adjacency row tile"
    row_steps = N // Nr
    grid = (B // Bt, row_steps)

    project_first = (F_out <= F_in) and (row_steps == 1)
    vpu_agg = N <= _VPU_AGG_MAX_N
    flat_out = (F_out % 128 != 0
                and (Nr * F_out) % 128 == 0
                and (Bt % 8 == 0 or Bt == B))

    work_bytes = _step_bytes(Bt, Nr, N, F_in, F_out, x_isz, adj_isz, w_isz)
    vmem_limit = int(min(budget, max(32 * 1024 * 1024, int(1.4 * work_bytes))))

    flops = 2 * B * (N * N * (F_out if project_first else F_in)
                     + N * F_in * F_out)
    bytes_accessed = int(row_steps * (x.size * x_isz + dinv.size * 4)
                         + adj_tilde.size * adj_isz
                         + weight_t.size * w_isz + F_out * 4
                         + B * N * F_out * x_isz)

    kernel = _make_gcn_kernel(project_first, vpu_agg, flat_out)

    if flat_out:
        out_shape = jax.ShapeDtypeStruct((B, N * F_out), x.dtype)
        out_spec = pl.BlockSpec((Bt, Nr * F_out), lambda g, r: (g, r))
    else:
        out_shape = jax.ShapeDtypeStruct((B, N, F_out), x.dtype)
        out_spec = pl.BlockSpec((Bt, Nr, F_out), lambda g, r: (g, r, 0))

    out = pl.pallas_call(
        kernel,
        out_shape=out_shape,
        grid_spec=pltpu.PrefetchScalarGridSpec(
            num_scalar_prefetch=0,
            grid=grid,
            in_specs=[
                pl.BlockSpec((Bt, N, F_in), lambda g, r: (g, 0, 0)),   # x (full rows)
                pl.BlockSpec((Bt, Nr, N), lambda g, r: (g, r, 0)),     # adjacency rows
                pl.BlockSpec((Bt, N, 1), lambda g, r: (g, 0, 0)),      # dinv (full)
                pl.BlockSpec((Bt, Nr, 1), lambda g, r: (g, r, 0)),     # dinv (rows)
                pl.BlockSpec((F_in, F_out), lambda g, r: (0, 0)),      # weight
                pl.BlockSpec((1, F_out), lambda g, r: (0, 0)),         # bias
            ],
            out_specs=out_spec,
        ),
        compiler_params=pltpu.CompilerParams(
            dimension_semantics=("parallel", "parallel"),
            vmem_limit_bytes=vmem_limit),
        cost_estimate=pl.CostEstimate(
            flops=flops, transcendentals=0, bytes_accessed=bytes_accessed),
    )(x, adj_tilde, dinv, dinv, weight_t, bias2d)

    if flat_out:
        out = out.reshape(B, N, F_out)
    if N != N0:
        out = out[:, :N0, :]
    return out


def gcn_layer_dense_dinv(x, adj_tilde, dinv_sqrt_mat, weight, bias, *,
                         adj_dtype=jnp.bfloat16, batch_tile=None, row_tile=None):
    """Same calling convention as the PyTorch module: takes the dense D^{-1/2}
    matrix [B, N, N] and the nn.Linear weight [F_out, F_in] / bias [F_out].

    NOTE: padded_reciprocal_sqrt_degree is assumed to be exactly diagonal (as it
    is by construction in Kipf's GCN normalization); off-diagonal entries, if
    any, are silently ignored."""
    dinv_vec = jnp.diagonal(dinv_sqrt_mat, axis1=1, axis2=2)   # [B, N]
    return gcn_layer(x, adj_tilde, dinv_vec, weight.T, bias,
                     adj_dtype=adj_dtype, batch_tile=batch_tile,
                     row_tile=row_tile)


# --------------------------------------------------------------------------- #
# Demo / self-test
# --------------------------------------------------------------------------- #
if __name__ == "__main__":
    def run_case(case, B, N, F_in, F_out, use_bias, adj_dtype=jnp.bfloat16,
                 batch_tile=None, row_tile=None):
        key = jax.random.fold_in(jax.random.PRNGKey(0), case)
        k_x, k_a, k_w, k_b = jax.random.split(key, 4)

        x = jax.random.normal(k_x, (B, N, F_in), dtype=jnp.float32)

        # Symmetric binary adjacency + self loops (A_tilde) and the dense
        # diagonal D^{-1/2} exactly as the PyTorch forward consumes it.
        a = (jax.random.uniform(k_a, (B, N, N)) > 0.5).astype(jnp.float32)
        a = jnp.maximum(a, jnp.swapaxes(a, 1, 2))
        a = a * (1.0 - jnp.eye(N, dtype=jnp.float32)[None])
        adj_tilde = a + jnp.eye(N, dtype=jnp.float32)[None]
        deg = jnp.sum(adj_tilde, axis=-1)
        dinv_mat = ((1.0 / jnp.sqrt(deg))[:, :, None]
                    * jnp.eye(N, dtype=jnp.float32)[None])

        # nn.Linear(input_dim, latent_dim): weight [F_out, F_in], bias [F_out].
        weight = 0.05 * jax.random.normal(k_w, (F_out, F_in), dtype=jnp.float32)
        bias = (0.01 * jax.random.normal(k_b, (F_out,), dtype=jnp.float32)
                if use_bias else jnp.zeros((F_out,), dtype=jnp.float32))

        out = gcn_layer_dense_dinv(x, adj_tilde, dinv_mat, weight, bias,
                                   adj_dtype=adj_dtype, batch_tile=batch_tile,
                                   row_tile=row_tile)
        out = jax.block_until_ready(out)

        # Plain-JAX reference of the original forward (full-precision einsums).
        hp = jax.lax.Precision.HIGHEST
        d_a = jnp.einsum("bij,bjk->bik", adj_tilde, dinv_mat, precision=hp)
        d_a_d = jnp.einsum("bij,bjk->bik", dinv_mat, d_a, precision=hp)
        d_a_d_x = jnp.einsum("bij,bjf->bif", d_a_d, x, precision=hp)
        ref = (jnp.einsum("bif,of->bio", d_a_d_x, weight, precision=hp)
               + bias[None, None, :])

        assert out.shape == (B, N, F_out)
        err = float(jnp.max(jnp.abs(out - ref)))
        assert jnp.allclose(out, ref, atol=3e-4, rtol=3e-3), \
            f"case {case}: max abs err {err}"

    # 1) aggregate-first (F_out > F_in), bf16 adjacency, VPU aggregation (N=8).
    run_case(0, B=8, N=8, F_in=32, F_out=128, use_bias=True)
    # 2) project-first (F_out <= F_in), f32 adjacency, 3D (non-flattened) output.
    run_case(1, B=4, N=16, F_in=128, F_out=64, use_bias=False, adj_dtype=None)
    # 3) flattened lane-dense output path (F_out=64, Bt=8), project-first.
    run_case(2, B=32, N=16, F_in=64, F_out=64, use_bias=True)
    # 4) MXU einsum aggregation path (N=32 > VPU threshold), aggregate-first.
    run_case(3, B=4, N=32, F_in=32, F_out=96, use_bias=True)
    # 5) adjacency row tiling (2 row steps) -> forced aggregate-first.
    run_case(4, B=4, N=16, F_in=32, F_out=32, use_bias=True, row_tile=8)
    # 6) N not a multiple of 8 -> padded to 16 and sliced back.
    run_case(5, B=2, N=10, F_in=16, F_out=32, use_bias=True)

    print("KERNEL_OK")
</pallas_src>

<mosaic_0001>
module attributes {stable_mosaic.version = 11 : i64} {
  func.func @kernel(%arg0: i32, %arg1: i32, %arg2: memref<2x8x32xf32, #tpu.memory_space<vmem>>, %arg3: memref<2x8x8xbf16, #tpu.memory_space<vmem>>, %arg4: memref<2x8x1xf32, #tpu.memory_space<vmem>>, %arg5: memref<2x8x1xf32, #tpu.memory_space<vmem>>, %arg6: memref<32x128xf32, #tpu.memory_space<vmem>>, %arg7: memref<1x128xf32, #tpu.memory_space<vmem>>, %arg8: memref<2x8x128xf32, #tpu.memory_space<vmem>>) attributes {dimension_semantics = [#tpu.dimension_semantics<parallel>, #tpu.dimension_semantics<parallel>], iteration_bounds = array<i64: 4, 1>, scalar_prefetch = 0 : i64, scratch_operands = 0 : i64, tpu.core_type = #tpu.core_type<tc>, window_params = [{transform_indices = @transform_0, window_bounds = array<i64: 2, 8, 32>}, {transform_indices = @transform_1, window_bounds = array<i64: 2, 8, 8>}, {transform_indices = @transform_2, window_bounds = array<i64: 2, 8, 1>}, {transform_indices = @transform_3, window_bounds = array<i64: 2, 8, 1>}, {pipeline_mode = #tpu.pipeline_mode<synchronous>, transform_indices = @transform_4, window_bounds = array<i64: 32, 128>}, {pipeline_mode = #tpu.pipeline_mode<synchronous>, transform_indices = @transform_5, window_bounds = array<i64: 1, 128>}, {transform_indices = @transform_6, window_bounds = array<i64: 2, 8, 128>}]} {
    %c0 = arith.constant 0 : index
    %c0_0 = arith.constant 0 : index
    %c0_1 = arith.constant 0 : index
    %0 = vector.load %arg3[%c0, %c0_0, %c0_1] : memref<2x8x8xbf16, #tpu.memory_space<vmem>>, vector<2x8x8xbf16>
    %1 = arith.extf %0 : vector<2x8x8xbf16> to vector<2x8x8xf32>
    %c0_2 = arith.constant 0 : index
    %c0_3 = arith.constant 0 : index
    %c0_4 = arith.constant 0 : index
    %2 = vector.load %arg4[%c0_2, %c0_3, %c0_4] : memref<2x8x1xf32, #tpu.memory_space<vmem>>, vector<2x8x1xf32>
    %c0_5 = arith.constant 0 : index
    %c0_6 = arith.constant 0 : index
    %c0_7 = arith.constant 0 : index
    %3 = vector.load %arg5[%c0_5, %c0_6, %c0_7] : memref<2x8x1xf32, #tpu.memory_space<vmem>>, vector<2x8x1xf32>
    %c0_8 = arith.constant 0 : index
    %c0_9 = arith.constant 0 : index
    %4 = vector.load %arg6[%c0_8, %c0_9] : memref<32x128xf32, #tpu.memory_space<vmem>>, vector<32x128xf32>
    %c0_10 = arith.constant 0 : index
    %c0_11 = arith.constant 0 : index
    %5 = vector.load %arg7[%c0_10, %c0_11] : memref<1x128xf32, #tpu.memory_space<vmem>>, vector<1x128xf32>
    %c0_12 = arith.constant 0 : index
    %c0_13 = arith.constant 0 : index
    %c0_14 = arith.constant 0 : index
    %6 = vector.load %arg2[%c0_12, %c0_13, %c0_14] : memref<2x8x32xf32, #tpu.memory_space<vmem>>, vector<2x8x32xf32>
    %7 = vector.broadcast %2 : vector<2x8x1xf32> to vector<2x8x32xf32>
    %8 = arith.mulf %7, %6 : vector<2x8x32xf32>
    %9 = vector.extract_strided_slice %1 {offsets = [0, 0, 0], sizes = [2, 8, 1], strides = [1, 1, 1]} : vector<2x8x8xf32> to vector<2x8x1xf32>
    %10 = vector.extract_strided_slice %8 {offsets = [0, 0, 0], sizes = [2, 1, 32], strides = [1, 1, 1]} : vector<2x8x32xf32> to vector<2x1x32xf32>
    %11 = vector.broadcast %9 : vector<2x8x1xf32> to vector<2x8x32xf32>
    %12 = vector.broadcast %10 : vector<2x1x32xf32> to vector<2x8x32xf32>
    %13 = arith.mulf %11, %12 : vector<2x8x32xf32>
    %14 = vector.extract_strided_slice %1 {offsets = [0, 0, 1], sizes = [2, 8, 1], strides = [1, 1, 1]} : vector<2x8x8xf32> to vector<2x8x1xf32>
    %15 = vector.extract_strided_slice %8 {offsets = [0, 1, 0], sizes = [2, 1, 32], strides = [1, 1, 1]} : vector<2x8x32xf32> to vector<2x1x32xf32>
    %16 = vector.broadcast %14 : vector<2x8x1xf32> to vector<2x8x32xf32>
    %17 = vector.broadcast %15 : vector<2x1x32xf32> to vector<2x8x32xf32>
    %18 = arith.mulf %16, %17 : vector<2x8x32xf32>
    %19 = arith.addf %13, %18 : vector<2x8x32xf32>
    %20 = vector.extract_strided_slice %1 {offsets = [0, 0, 2], sizes = [2, 8, 1], strides = [1, 1, 1]} : vector<2x8x8xf32> to vector<2x8x1xf32>
    %21 = vector.extract_strided_slice %8 {offsets = [0, 2, 0], sizes = [2, 1, 32], strides = [1, 1, 1]} : vector<2x8x32xf32> to vector<2x1x32xf32>
    %22 = vector.broadcast %20 : vector<2x8x1xf32> to vector<2x8x32xf32>
    %23 = vector.broadcast %21 : vector<2x1x32xf32> to vector<2x8x32xf32>
    %24 = arith.mulf %22, %23 : vector<2x8x32xf32>
    %25 = arith.addf %19, %24 : vector<2x8x32xf32>
    %26 = vector.extract_strided_slice %1 {offsets = [0, 0, 3], sizes = [2, 8, 1], strides = [1, 1, 1]} : vector<2x8x8xf32> to vector<2x8x1xf32>
    %27 = vector.extract_strided_slice %8 {offsets = [0, 3, 0], sizes = [2, 1, 32], strides = [1, 1, 1]} : vector<2x8x32xf32> to vector<2x1x32xf32>
    %28 = vector.broadcast %26 : vector<2x8x1xf32> to vector<2x8x32xf32>
    %29 = vector.broadcast %27 : vector<2x1x32xf32> to vector<2x8x32xf32>
    %30 = arith.mulf %28, %29 : vector<2x8x32xf32>
    %31 = arith.addf %25, %30 : vector<2x8x32xf32>
    %32 = vector.extract_strided_slice %1 {offsets = [0, 0, 4], sizes = [2, 8, 1], strides = [1, 1, 1]} : vector<2x8x8xf32> to vector<2x8x1xf32>
    %33 = vector.extract_strided_slice %8 {offsets = [0, 4, 0], sizes = [2, 1, 32], strides = [1, 1, 1]} : vector<2x8x32xf32> to vector<2x1x32xf32>
    %34 = vector.broadcast %32 : vector<2x8x1xf32> to vector<2x8x32xf32>
    %35 = vector.broadcast %33 : vector<2x1x32xf32> to vector<2x8x32xf32>
    %36 = arith.mulf %34, %35 : vector<2x8x32xf32>
    %37 = arith.addf %31, %36 : vector<2x8x32xf32>
    %38 = vector.extract_strided_slice %1 {offsets = [0, 0, 5], sizes = [2, 8, 1], strides = [1, 1, 1]} : vector<2x8x8xf32> to vector<2x8x1xf32>
    %39 = vector.extract_strided_slice %8 {offsets = [0, 5, 0], sizes = [2, 1, 32], strides = [1, 1, 1]} : vector<2x8x32xf32> to vector<2x1x32xf32>
    %40 = vector.broadcast %38 : vector<2x8x1xf32> to vector<2x8x32xf32>
    %41 = vector.broadcast %39 : vector<2x1x32xf32> to vector<2x8x32xf32>
    %42 = arith.mulf %40, %41 : vector<2x8x32xf32>
    %43 = arith.addf %37, %42 : vector<2x8x32xf32>
    %44 = vector.extract_strided_slice %1 {offsets = [0, 0, 6], sizes = [2, 8, 1], strides = [1, 1, 1]} : vector<2x8x8xf32> to vector<2x8x1xf32>
    %45 = vector.extract_strided_slice %8 {offsets = [0, 6, 0], sizes = [2, 1, 32], strides = [1, 1, 1]} : vector<2x8x32xf32> to vector<2x1x32xf32>
    %46 = vector.broadcast %44 : vector<2x8x1xf32> to vector<2x8x32xf32>
    %47 = vector.broadcast %45 : vector<2x1x32xf32> to vector<2x8x32xf32>
    %48 = arith.mulf %46, %47 : vector<2x8x32xf32>
    %49 = arith.addf %43, %48 : vector<2x8x32xf32>
    %50 = vector.extract_strided_slice %1 {offsets = [0, 0, 7], sizes = [2, 8, 1], strides = [1, 1, 1]} : vector<2x8x8xf32> to vector<2x8x1xf32>
    %51 = vector.extract_strided_slice %8 {offsets = [0, 7, 0], sizes = [2, 1, 32], strides = [1, 1, 1]} : vector<2x8x32xf32> to vector<2x1x32xf32>
    %52 = vector.broadcast %50 : vector<2x8x1xf32> to vector<2x8x32xf32>
    %53 = vector.broadcast %51 : vector<2x1x32xf32> to vector<2x8x32xf32>
    %54 = arith.mulf %52, %53 : vector<2x8x32xf32>
    %55 = arith.addf %49, %54 : vector<2x8x32xf32>
    %56 = vector.broadcast %3 : vector<2x8x1xf32> to vector<2x8x32xf32>
    %57 = arith.mulf %56, %55 : vector<2x8x32xf32>
    %58 = vector.shape_cast %57 : vector<2x8x32xf32> to vector<16x32xf32>
    %cst = arith.constant dense<0.000000e+00> : vector<16x128xf32>
    %59 = tpu.matmul %58, %4, %cst {dimension_numbers = #tpu.dot_dimension_numbers<[1], [0], [0], [1], [0, 0, 1, 1], [], []>} : vector<16x32xf32>, vector<32x128xf32>, vector<16x128xf32> -> vector<16x128xf32>
    %60 = vector.shape_cast %59 : vector<16x128xf32> to vector<2x8x128xf32>
    %61 = vector.shape_cast %5 : vector<1x128xf32> to vector<1x1x128xf32>
    %62 = vector.broadcast %61 : vector<1x1x128xf32> to vector<2x8x128xf32>
    %63 = arith.addf %60, %62 : vector<2x8x128xf32>
    %c0_15 = arith.constant 0 : index
    %c0_16 = arith.constant 0 : index
    %c0_17 = arith.constant 0 : index
    %64 = vector.load %arg8[%c0_15, %c0_16, %c0_17] : memref<2x8x128xf32, #tpu.memory_space<vmem>>, vector<2x8x128xf32>
    tpu.vector_store %arg8[%c0_15, %c0_16, %c0_17], %63 {strides = array<i32>} : memref<2x8x128xf32, #tpu.memory_space<vmem>>, vector<2x8x128xf32>,
    return
  }
  func.func @transform_0(%arg0: i32, %arg1: i32) -> (i32, i32, i32) {
    %c0_i32 = arith.constant 0 : i32
    %c0_i32_0 = arith.constant 0 : i32
    %c0_i32_1 = arith.constant 0 : i32
    return %arg0, %c0_i32, %c0_i32_0 : i32, i32, i32
  }
  func.func @transform_1(%arg0: i32, %arg1: i32) -> (i32, i32, i32) {
    %c0_i32 = arith.constant 0 : i32
    %c0_i32_0 = arith.constant 0 : i32
    return %arg0, %arg1, %c0_i32 : i32, i32, i32
  }
  func.func @transform_2(%arg0: i32, %arg1: i32) -> (i32, i32, i32) {
    %c0_i32 = arith.constant 0 : i32
    %c0_i32_0 = arith.constant 0 : i32
    %c0_i32_1 = arith.constant 0 : i32
    return %arg0, %c0_i32, %c0_i32_0 : i32, i32, i32
  }
  func.func @transform_3(%arg0: i32, %arg1: i32) -> (i32, i32, i32) {
    %c0_i32 = arith.constant 0 : i32
    %c0_i32_0 = arith.constant 0 : i32
    return %arg0, %arg1, %c0_i32 : i32, i32, i32
  }
  func.func @transform_4(%arg0: i32, %arg1: i32) -> (i32, i32) {
    %c0_i32 = arith.constant 0 : i32
    %c0_i32_0 = arith.constant 0 : i32
    %c0_i32_1 = arith.constant 0 : i32
    return %c0_i32, %c0_i32_0 : i32, i32
  }
  func.func @transform_5(%arg0: i32, %arg1: i32) -> (i32, i32) {
    %c0_i32 = arith.constant 0 : i32
    %c0_i32_0 = arith.constant 0 : i32
    %c0_i32_1 = arith.constant 0 : i32
    return %c0_i32, %c0_i32_0 : i32, i32
  }
  func.func @transform_6(%arg0: i32, %arg1: i32) -> (i32, i32, i32) {
    %c0_i32 = arith.constant 0 : i32
    %c0_i32_0 = arith.constant 0 : i32
    return %arg0, %arg1, %c0_i32 : i32, i32, i32
  }
}

</mosaic_0001>

<llo_original>
// kernel: tpu_custom_call.1
$region0: #{tpu_custom_call.1}
  #allocation0 [shape = 'u32[]', space=smem, size = 0x4, offset = 0x4, fixed_abs, tag = 'smem constant byte address 0x4 - core index']
  #allocation1 [shape = 'u32[144,128]{1,0:T(1,128)}', space=vmem, size = 0x12000, scoped, tag = 'internal scratch']
  %s0 = inlined_call_operand.vmem [shape: f32[8,8,32], index: 0, kind: input, shape index: {}]
  %s1 = inlined_call_operand.vmem [shape: bf16[8,8,8], index: 1, kind: input, shape index: {}]
  %s2 = inlined_call_operand.vmem [shape: f32[8,8,1], index: 2, kind: input, shape index: {}]
  %s3 = inlined_call_operand.vmem [shape: f32[8,8,1], index: 3, kind: input, shape index: {}]
  %s4 = inlined_call_operand.vmem [shape: f32[32,128], index: 4, kind: input, shape index: {}]
  %s5 = inlined_call_operand.vmem [shape: f32[1,128], index: 5, kind: input, shape index: {}]
  %s6 = inlined_call_operand.hbm [shape: f32[8,8,128], index: 6, kind: output, shape index: {}]
  %s7 = sld [smem:[#allocation0]]
  $region57: #{tpu_custom_call.1} parent=0
    _
  %s9 = ssub.s32 1, %s7
  %s10 = scalar_select 0, %s9, %s7
  $region1: #{tpu_custom_call.1} parent=0
    #allocation2 [shape = 'u8[16384]{0}', space=vmem, size = 0x4000, scoped, tag = 'output window, operand 0']
    #allocation3 [shape = 's32[2]{0}', space=sflag, size = 0x8, scoped, tag = 'scoped memory for tpu_custom_call.1']
    %11 = vsyncpa [#allocation3], 0
    %s12 = scalar_lea.sflag [#allocation3], 1
    %13 = vsyncpa %s12, 0
    loop: start=0, step=1, limit=6
    $region2: #{tpu_custom_call.1} parent=1 // loop_pre_header
      _
    $region3: #{tpu_custom_call.1} parent=1 // loop_header
      %s15 = sphi 0, %s19
      %p16 = scmp.ge.s32.totalorder %s15, 6
      %s22 = sphi 0, %s34
      %s23 = sphi 0, %s30
      %s24 = sphi 0, %s22
      %s25 = sphi 0, %s23
      %s26 = sphi 0, %s24
      %s27 = sphi 0, %s25
      %s37 = sphi 0, %s39
      %s40 = sphi 0, %s37
      %s41 = sphi 0, %s40
      %s57 = sphi 0, %s41
      %s65 = sphi 0, %s67
      %s68 = sphi 0, %s65
      %s69 = sphi 0, %s68
      %s85 = sphi 0, %s69
      %s91 = sphi 0, %s93
      %s94 = sphi 0, %s91
      %s95 = sphi 0, %s94
      %s111 = sphi 0, %s95
      %s119 = sphi 0, %s121
      %s122 = sphi 0, %s119
      %s123 = sphi 0, %s122
      %s139 = sphi 0, %s123
      %s143 = sphi 0, %s143
      %s145 = sphi 0, %s143
      %s146 = sphi 0, %s145
      %s160 = sphi 0, %s146
      %s164 = sphi 0, %s164
      %s166 = sphi 0, %s164
      %s167 = sphi 0, %s166
      %s181 = sphi 0, %s167
      %s189 = sphi 0, %s191
      %s192 = sphi 0, %s189
      %s193 = sphi 0, %s192
      %s209 = sphi 0, %s193
    $region4: #{tpu_custom_call.1} parent=1 // loop_header_branch
      %18 = sbr.rel (%p16) target = $region8
    $region5: #{tpu_custom_call.1} parent=1 // loop_body
      %s20 = ssub.s32 %s15, 1
      %s21 = ssub.s32 %s15, 2
      %s28 = sadd.s32 1, %s23
      %p29 = scmp.ge.s32.totalorder %s28, 1
      %s30 = scalar_select %p29, 0, %s28
      %s31 = sadd.s32 1, %s22
      %s32 = scalar_select %p29, %s31, %s22
      %p33 = scmp.ge.s32.totalorder %s32, 4
      %s34 = scalar_select %p33, 0, %s32
      %s35 = ssub.s32 %s22, %s34
      %p36 = scmp.eq.s32.totalorder %s35, 0
      %s38 = sadd.s32 %s37, 1
      %s39 = scalar_select %p36, %s37, %s38
      %p42 = pneg %p36
      %p43 = scmp.eq.s32.totalorder %s15, 3
      %p44 = por %p42, %p43
      %p45 = scmp.ne.s32.totalorder %s37, %s40
      %p46 = scmp.eq.s32.totalorder %s15, 0
      %p47 = por %p45, %p46
      %p48 = scmp.ne.s32.totalorder %s37, %s40
      %p49 = scmp.eq.s32.totalorder %s20, 3
      %p50 = por %p48, %p49
      %p51 = scmp.ne.s32.totalorder %s40, %s41
      %p52 = scmp.eq.s32.totalorder %s20, 0
      %p53 = por %p51, %p52
      %p54 = scmp.ne.s32.totalorder %s40, %s41
      %p55 = scmp.eq.s32.totalorder %s21, 3
      %p56 = por %p54, %p55
      %p58 = scmp.ne.s32.totalorder %s41, %s57
      %p59 = scmp.eq.s32.totalorder %s21, 0
      %p60 = por %p58, %p59
      %s61 = ssub.s32 %s22, %s34
      %s62 = ssub.s32 %s23, %s30
      %s63 = sor.u32 %s61, %s62
      %p64 = scmp.eq.s32.totalorder %s63, 0
      %s66 = sadd.s32 %s65, 1
      %s67 = scalar_select %p64, %s65, %s66
      %p70 = pneg %p64
      %p71 = scmp.eq.s32.totalorder %s15, 3
      %p72 = por %p70, %p71
      %p73 = scmp.ne.s32.totalorder %s65, %s68
      %p74 = scmp.eq.s32.totalorder %s15, 0
      %p75 = por %p73, %p74
      %p76 = scmp.ne.s32.totalorder %s65, %s68
      %p77 = scmp.eq.s32.totalorder %s20, 3
      %p78 = por %p76, %p77
      %p79 = scmp.ne.s32.totalorder %s68, %s69
      %p80 = scmp.eq.s32.totalorder %s20, 0
      %p81 = por %p79, %p80
      %p82 = scmp.ne.s32.totalorder %s68, %s69
      %p83 = scmp.eq.s32.totalorder %s21, 3
      %p84 = por %p82, %p83
      %p86 = scmp.ne.s32.totalorder %s69, %s85
      %p87 = scmp.eq.s32.totalorder %s21, 0
      %p88 = por %p86, %p87
      %s89 = ssub.s32 %s22, %s34
      %p90 = scmp.eq.s32.totalorder %s89, 0
      %s92 = sadd.s32 %s91, 1
      %s93 = scalar_select %p90, %s91, %s92
      %p96 = pneg %p90
      %p97 = scmp.eq.s32.totalorder %s15, 3
      %p98 = por %p96, %p97
      %p99 = scmp.ne.s32.totalorder %s91, %s94
      %p100 = scmp.eq.s32.totalorder %s15, 0
      %p101 = por %p99, %p100
      %p102 = scmp.ne.s32.totalorder %s91, %s94
      %p103 = scmp.eq.s32.totalorder %s20, 3
      %p104 = por %p102, %p103
      %p105 = scmp.ne.s32.totalorder %s94, %s95
      %p106 = scmp.eq.s32.totalorder %s20, 0
      %p107 = por %p105, %p106
      %p108 = scmp.ne.s32.totalorder %s94, %s95
      %p109 = scmp.eq.s32.totalorder %s21, 3
      %p110 = por %p108, %p109
      %p112 = scmp.ne.s32.totalorder %s95, %s111
      %p113 = scmp.eq.s32.totalorder %s21, 0
      %p114 = por %p112, %p113
      %s115 = ssub.s32 %s22, %s34
      %s116 = ssub.s32 %s23, %s30
      %s117 = sor.u32 %s115, %s116
      %p118 = scmp.eq.s32.totalorder %s117, 0
      %s120 = sadd.s32 %s119, 1
      %s121 = scalar_select %p118, %s119, %s120
      %p124 = pneg %p118
      %p125 = scmp.eq.s32.totalorder %s15, 3
      %p126 = por %p124, %p125
      %p127 = scmp.ne.s32.totalorder %s119, %s122
      %p128 = scmp.eq.s32.totalorder %s15, 0
      %p129 = por %p127, %p128
      %p130 = scmp.ne.s32.totalorder %s119, %s122
      %p131 = scmp.eq.s32.totalorder %s20, 3
      %p132 = por %p130, %p131
      %p133 = scmp.ne.s32.totalorder %s122, %s123
      %p134 = scmp.eq.s32.totalorder %s20, 0
      %p135 = por %p133, %p134
      %p136 = scmp.ne.s32.totalorder %s122, %s123
      %p137 = scmp.eq.s32.totalorder %s21, 3
      %p138 = por %p136, %p137
      %p140 = scmp.ne.s32.totalorder %s123, %s139
      %p141 = scmp.eq.s32.totalorder %s21, 0
      %p142 = por %p140, %p141
      %s144 = sadd.s32 %s143, 1
      %p147 = scmp.eq.s32.totalorder %s15, 3
      %p148 = scmp.ne.s32.totalorder %s143, %s145
      %p149 = scmp.eq.s32.totalorder %s15, 0
      %p150 = por %p148, %p149
      %p151 = scmp.ne.s32.totalorder %s143, %s145
      %p152 = scmp.eq.s32.totalorder %s20, 3
      %p153 = por %p151, %p152
      %p154 = scmp.ne.s32.totalorder %s145, %s146
      %p155 = scmp.eq.s32.totalorder %s20, 0
      %p156 = por %p154, %p155
      %p157 = scmp.ne.s32.totalorder %s145, %s146
      %p158 = scmp.eq.s32.totalorder %s21, 3
      %p159 = por %p157, %p158
      %p161 = scmp.ne.s32.totalorder %s146, %s160
      %p162 = scmp.eq.s32.totalorder %s21, 0
      %p163 = por %p161, %p162
      %s165 = sadd.s32 %s164, 1
      %p168 = scmp.eq.s32.totalorder %s15, 3
      %p169 = scmp.ne.s32.totalorder %s164, %s166
      %p170 = scmp.eq.s32.totalorder %s15, 0
      %p171 = por %p169, %p170
      %p172 = scmp.ne.s32.totalorder %s164, %s166
      %p173 = scmp.eq.s32.totalorder %s20, 3
      %p174 = por %p172, %p173
      %p175 = scmp.ne.s32.totalorder %s166, %s167
      %p176 = scmp.eq.s32.totalorder %s20, 0
      %p177 = por %p175, %p176
      %p178 = scmp.ne.s32.totalorder %s166, %s167
      %p179 = scmp.eq.s32.totalorder %s21, 3
      %p180 = por %p178, %p179
      %p182 = scmp.ne.s32.totalorder %s167, %s181
      %p183 = scmp.eq.s32.totalorder %s21, 0
      %p184 = por %p182, %p183
      %s185 = ssub.s32 %s22, %s34
      %s186 = ssub.s32 %s23, %s30
      %s187 = sor.u32 %s185, %s186
      %p188 = scmp.eq.s32.totalorder %s187, 0
      %s190 = sadd.s32 %s189, 1
      %s191 = scalar_select %p188, %s189, %s190
      %p194 = pneg %p188
      %p195 = scmp.eq.s32.totalorder %s15, 3
      %p196 = por %p194, %p195
      %p197 = scmp.ne.s32.totalorder %s189, %s192
      %p198 = scmp.eq.s32.totalorder %s15, 0
      %p199 = por %p197, %p198
      %p200 = scmp.ne.s32.totalorder %s189, %s192
      %p201 = scmp.eq.s32.totalorder %s20, 3
      %p202 = por %p200, %p201
      %p203 = scmp.ne.s32.totalorder %s192, %s193
      %p204 = scmp.eq.s32.totalorder %s20, 0
      %p205 = por %p203, %p204
      %p206 = scmp.ne.s32.totalorder %s192, %s193
      %p207 = scmp.eq.s32.totalorder %s21, 3
      %p208 = por %p206, %p207
      %p210 = scmp.ne.s32.totalorder %s193, %s209
      %p211 = scmp.eq.s32.totalorder %s21, 0
      %p212 = por %p210, %p211
      %p213 = scmp.le.s32.totalorder 1, %s15
      %p214 = scmp.lt.s32.totalorder %s15, 5
      %p215 = pnand %p213, %p214
      %p216 = pneg %p215
      // Predicated region
      $region9: #{tpu_custom_call.1} parent=5 // pred_check
        _
      $region10: #{tpu_custom_call.1} parent=5 // pred_check_branch
        %218 = sbr.rel (%p215) target = $region12
      $region11: #{tpu_custom_call.1} parent=5 // pred_region
        %s219 = ssub.s32 %s15, 1
        // Predicated region
        $region13: #{tpu_custom_call.1} parent=11 // pred_check
          %p220 = pneg %p156
        $region14: #{tpu_custom_call.1} parent=11 // pred_check_branch
          %222 = sbr.rel (%p220) target = $region16
        $region15: #{tpu_custom_call.1} parent=11 // pred_region
          _
        $region16: #{tpu_custom_call.1} parent=11 // pred_fallthru
          _
        // Predicated region
        $region17: #{tpu_custom_call.1} parent=11 // pred_check
          %p223 = pneg %p177
        $region18: #{tpu_custom_call.1} parent=11 // pred_check_branch
          %225 = sbr.rel (%p223) target = $region20
        $region19: #{tpu_custom_call.1} parent=11 // pred_region
          _
        $region20: #{tpu_custom_call.1} parent=11 // pred_fallthru
          _
      $region12: #{tpu_custom_call.1} parent=5 // pred_fallthru
        _
      %p226 = scmp.lt.s32.totalorder %s15, 4
      // Predicated region
      $region21: #{tpu_custom_call.1} parent=5 // pred_check
        %p227 = pneg %p226
      $region22: #{tpu_custom_call.1} parent=5 // pred_check_branch
        %229 = sbr.rel (%p227) target = $region24
      $region23: #{tpu_custom_call.1} parent=5 // pred_region
        // Predicated region
        $region25: #{tpu_custom_call.1} parent=23 // pred_check
          %p230 = pneg %p47
        $region26: #{tpu_custom_call.1} parent=23 // pred_check_branch
          %232 = sbr.rel (%p230) target = $region28
        $region27: #{tpu_custom_call.1} parent=23 // pred_region
          %s233 = smul.u32 2, %s22
          %p234 = scmp.lt.s32.totalorder %s233, 7
          %s235 = scalar_select %p234, %s233, 7
          %s236 = smul.addr %s235, 8
          %s237 = scalar_lea.vmem %s0, %s236
          %s238 = smul.u32 2, %s22
        $region28: #{tpu_custom_call.1} parent=23 // pred_fallthru
          _
        // Predicated region
        $region29: #{tpu_custom_call.1} parent=23 // pred_check
          %p239 = pneg %p75
        $region30: #{tpu_custom_call.1} parent=23 // pred_check_branch
          %241 = sbr.rel (%p239) target = $region32
        $region31: #{tpu_custom_call.1} parent=23 // pred_region
          %s242 = smul.u32 2, %s22
          %p243 = scmp.lt.s32.totalorder %s242, 7
          %s244 = scalar_select %p243, %s242, 7
          %p245 = scmp.lt.s32.totalorder %s23, 0
          %s246 = scalar_select %p245, %s23, 0
          %s247 = sadd.s32 %s246, %s244
          %s248 = smul.addr %s247, 4
          %s249 = scalar_lea.vmem %s1, %s248
          %s250 = smul.u32 2, %s22
        $region32: #{tpu_custom_call.1} parent=23 // pred_fallthru
          _
        // Predicated region
        $region33: #{tpu_custom_call.1} parent=23 // pred_check
          %p251 = pneg %p101
        $region34: #{tpu_custom_call.1} parent=23 // pred_check_branch
          %253 = sbr.rel (%p251) target = $region36
        $region35: #{tpu_custom_call.1} parent=23 // pred_region
          %s254 = smul.u32 2, %s22
          %p255 = scmp.lt.s32.totalorder %s254, 7
          %s256 = scalar_select %p255, %s254, 7
          %s257 = smul.addr %s256, 8
          %s258 = scalar_lea.vmem %s2, %s257
          %s259 = smul.u32 2, %s22
        $region36: #{tpu_custom_call.1} parent=23 // pred_fallthru
          _
        // Predicated region
        $region37: #{tpu_custom_call.1} parent=23 // pred_check
          %p260 = pneg %p129
        $region38: #{tpu_custom_call.1} parent=23 // pred_check_branch
          %262 = sbr.rel (%p260) target = $region40
        $region39: #{tpu_custom_call.1} parent=23 // pred_region
          %s263 = smul.u32 2, %s22
          %p264 = scmp.lt.s32.totalorder %s263, 7
          %s265 = scalar_select %p264, %s263, 7
          %p266 = scmp.lt.s32.totalorder %s23, 0
          %s267 = scalar_select %p266, %s23, 0
          %s268 = sadd.s32 %s267, %s265
          %s269 = smul.addr %s268, 8
          %s270 = scalar_lea.vmem %s3, %s269
          %s271 = smul.u32 2, %s22
        $region40: #{tpu_custom_call.1} parent=23 // pred_fallthru
          _
      $region24: #{tpu_custom_call.1} parent=5 // pred_fallthru
        _
      %p272 = scmp.le.s32.totalorder 1, %s15
      %p273 = scmp.lt.s32.totalorder %s15, 5
      %p274 = pnand %p272, %p273
      %p275 = pneg %p274
      // Predicated region
      $region41: #{tpu_custom_call.1} parent=5 // pred_check
        _
      $region42: #{tpu_custom_call.1} parent=5 // pred_check_branch
        %277 = sbr.rel (%p274) target = $region44
      $region43: #{tpu_custom_call.1} parent=5 // pred_region
        %s278 = ssub.s32 %s15, 1
        %s279 = smul.u32 2, %s24
        %p280 = scmp.lt.s32.totalorder %s279, 7
        %s281 = scalar_select %p280, %s279, 7
        %s282 = smul.addr %s281, 8
        %s283 = scalar_lea.vmem %s0, %s282
        %p284 = pneg %p53
        %p285 = pneg %p50
        %s286 = smul.u32 2, %s24
        %p287 = scmp.lt.s32.totalorder %s286, 7
        %s288 = scalar_select %p287, %s286, 7
        %p289 = scmp.lt.s32.totalorder %s25, 0
        %s290 = scalar_select %p289, %s25, 0
        %s291 = sadd.s32 %s290, %s288
        %s292 = smul.addr %s291, 4
        %s293 = scalar_lea.vmem %s1, %s292
        %p294 = pneg %p81
        %p295 = pneg %p78
        %s296 = smul.u32 2, %s24
        %p297 = scmp.lt.s32.totalorder %s296, 7
        %s298 = scalar_select %p297, %s296, 7
        %s299 = smul.addr %s298, 8
        %s300 = scalar_lea.vmem %s2, %s299
        %p301 = pneg %p107
        %p302 = pneg %p104
        %s303 = smul.u32 2, %s24
        %p304 = scmp.lt.s32.totalorder %s303, 7
        %s305 = scalar_select %p304, %s303, 7
        %p306 = scmp.lt.s32.totalorder %s25, 0
        %s307 = scalar_select %p306, %s25, 0
        %s308 = sadd.s32 %s307, %s305
        %s309 = smul.addr %s308, 8
        %s310 = scalar_lea.vmem %s3, %s309
        %p311 = pneg %p135
        %p312 = pneg %p132
        %p313 = pneg %p156
        %p314 = pneg %p153
        %p315 = pneg %p177
        %p316 = pneg %p174
        %p317 = pneg %p205
        %p318 = pneg %p202
        %s319 = sand.u32 %s192, 1
        %s320 = scalar_lea.sflag [#allocation3], %s319
        %s321 = sand.u32 %s192, 1
        %s322 = smul.addr %s321, 16
        %s323 = scalar_lea.vmem [#allocation2], %s322
        %s324 = smul.u32 2, %s24
        %p325 = scmp.lt.s32.totalorder %s324, 7
        %s326 = scalar_select %p325, %s324, 7
        %s327 = smul.addr %s326, 8
        %s328 = scalar_lea.vmem %s0, %s327
        %s329 = smul.u32 2, %s24
        %s330 = smul.u32 2, %s24
        %p331 = scmp.lt.s32.totalorder %s330, 7
        %s332 = scalar_select %p331, %s330, 7
        %p333 = scmp.lt.s32.totalorder %s25, 0
        %s334 = scalar_select %p333, %s25, 0
        %s335 = sadd.s32 %s334, %s332
        %s336 = smul.addr %s335, 4
        %s337 = scalar_lea.vmem %s1, %s336
        %s338 = smul.u32 2, %s24
        %s339 = smul.u32 2, %s24
        %p340 = scmp.lt.s32.totalorder %s339, 7
        %s341 = scalar_select %p340, %s339, 7
        %s342 = smul.addr %s341, 8
        %s343 = scalar_lea.vmem %s2, %s342
        %s344 = smul.u32 2, %s24
        %s345 = smul.u32 2, %s24
        %p346 = scmp.lt.s32.totalorder %s345, 7
        %s347 = scalar_select %p346, %s345, 7
        %p348 = scmp.lt.s32.totalorder %s25, 0
        %s349 = scalar_select %p348, %s25, 0
        %s350 = sadd.s32 %s349, %s347
        %s351 = smul.addr %s350, 8
        %s352 = scalar_lea.vmem %s3, %s351
        %s353 = smul.u32 2, %s24
        %s354 = smul.u32 2, %s24
        %v355 = vld [vmem:[%s337] sm:$0xf]
        %v356 = vld [vmem:[%s337 + $0x4] sm:$0xf]
        %v357 = vunpack.c.l.bf16 %v355
        %v358 = vunpack.c.l.bf16 %v356
        %v359 = vld [vmem:[%s343] sm:$0xff]
        %v360 = vld [vmem:[%s343 + $0x8] sm:$0xff]
        %v361 = vld [vmem:[%s352] sm:$0xff]
        %v362 = vld [vmem:[%s352 + $0x8] sm:$0xff]
        %v363 = vld [vmem:[%s4] sm:$0xff]
        %v364 = vld [vmem:[%s4 + $0x8] sm:$0xff]
        %v365 = vld [vmem:[%s4 + $0x10] sm:$0xff]
        %v366 = vld [vmem:[%s4 + $0x18] sm:$0xff]
        %v367 = vld [vmem:[%s5] sm:$0x1]
        %v368 = vld [vmem:[%s328] sm:$0xff]
        %v369 = vld [vmem:[%s328 + $0x8] sm:$0xff]
        %371 = vset.pattern.permute.xlu0 0
        %372 = vperm.xlu0 %371, %v359
        %v373 = vpop.permute.xlu0 %372
        %376 = vset.pattern.permute.xlu0 0
        %377 = vperm.xlu0 %376, %v360
        %v378 = vpop.permute.xlu0 %377
        %v380 = vmul.f32 %v373, %v368
        %v381 = vmul.f32 %v378, %v369
        %383 = vset.pattern.permute.xlu0 0
        %384 = vperm.xlu0 %383, %v357
        %v385 = vpop.permute.xlu0 %384
        %388 = vset.pattern.permute.xlu0 0
        %389 = vperm.xlu0 %388, %v358
        %v390 = vpop.permute.xlu0 %389
        %v392 = vlaneseq
        %v393 = vshrl.u32 %v392, 7
        %v394 = vsub.s32 0, %v393
        %v395 = vrot.slane %v380, %v394
        %v396 = vlaneseq
        %v397 = vshrl.u32 %v396, 7
        %v398 = vsub.s32 0, %v397
        %v399 = vrot.slane %v381, %v398
        %v400 = vmul.f32 %v385, %v395
        %v401 = vmul.f32 %v390, %v399
        %402 = vset.pattern.permute.xlu0 1
        %403 = vperm.xlu0 %402, %v357
        %v404 = vpop.permute.xlu0 %403
        %406 = vset.pattern.permute.xlu0 1
        %407 = vperm.xlu0 %406, %v358
        %v408 = vpop.permute.xlu0 %407
        %v410 = vlaneseq
        %v411 = vshrl.u32 %v410, 7
        %v412 = vsub.s32 1, %v411
        %v413 = vrot.slane %v380, %v412
        %v414 = vlaneseq
        %v415 = vshrl.u32 %v414, 7
        %v416 = vsub.s32 1, %v415
        %v417 = vrot.slane %v381, %v416
        %v418 = vmul.f32 %v404, %v413
        %v419 = vmul.f32 %v408, %v417
        %v420 = vadd.f32 %v400, %v418
        %v421 = vadd.f32 %v401, %v419
        %422 = vset.pattern.permute.xlu0 2
        %423 = vperm.xlu0 %422, %v357
        %v424 = vpop.permute.xlu0 %423
        %426 = vset.pattern.permute.xlu0 2
        %427 = vperm.xlu0 %426, %v358
        %v428 = vpop.permute.xlu0 %427
        %v430 = vlaneseq
        %v431 = vshrl.u32 %v430, 7
        %v432 = vsub.s32 2, %v431
        %v433 = vrot.slane %v380, %v432
        %v434 = vlaneseq
        %v435 = vshrl.u32 %v434, 7
        %v436 = vsub.s32 2, %v435
        %v437 = vrot.slane %v381, %v436
        %v438 = vmul.f32 %v424, %v433
        %v439 = vmul.f32 %v428, %v437
        %v440 = vadd.f32 %v420, %v438
        %v441 = vadd.f32 %v421, %v439
        %442 = vset.pattern.permute.xlu0 3
        %443 = vperm.xlu0 %442, %v357
        %v444 = vpop.permute.xlu0 %443
        %446 = vset.pattern.permute.xlu0 3
        %447 = vperm.xlu0 %446, %v358
        %v448 = vpop.permute.xlu0 %447
        %v450 = vlaneseq
        %v451 = vshrl.u32 %v450, 7
        %v452 = vsub.s32 3, %v451
        %v453 = vrot.slane %v380, %v452
        %v454 = vlaneseq
        %v455 = vshrl.u32 %v454, 7
        %v456 = vsub.s32 3, %v455
        %v457 = vrot.slane %v381, %v456
        %v458 = vmul.f32 %v444, %v453
        %v459 = vmul.f32 %v448, %v457
        %v460 = vadd.f32 %v440, %v458
        %v461 = vadd.f32 %v441, %v459
        %462 = vset.pattern.permute.xlu0 4
        %463 = vperm.xlu0 %462, %v357
        %v464 = vpop.permute.xlu0 %463
        %466 = vset.pattern.permute.xlu0 4
        %467 = vperm.xlu0 %466, %v358
        %v468 = vpop.permute.xlu0 %467
        %v470 = vlaneseq
        %v471 = vshrl.u32 %v470, 7
        %v472 = vsub.s32 4, %v471
        %v473 = vrot.slane %v380, %v472
        %v474 = vlaneseq
        %v475 = vshrl.u32 %v474, 7
        %v476 = vsub.s32 4, %v475
        %v477 = vrot.slane %v381, %v476
        %v478 = vmul.f32 %v464, %v473
        %v479 = vmul.f32 %v468, %v477
        %v480 = vadd.f32 %v460, %v478
        %v481 = vadd.f32 %v461, %v479
        %482 = vset.pattern.permute.xlu0 5
        %483 = vperm.xlu0 %482, %v357
        %v484 = vpop.permute.xlu0 %483
        %486 = vset.pattern.permute.xlu0 5
        %487 = vperm.xlu0 %486, %v358
        %v488 = vpop.permute.xlu0 %487
        %v490 = vlaneseq
        %v491 = vshrl.u32 %v490, 7
        %v492 = vsub.s32 5, %v491
        %v493 = vrot.slane %v380, %v492
        %v494 = vlaneseq
        %v495 = vshrl.u32 %v494, 7
        %v496 = vsub.s32 5, %v495
        %v497 = vrot.slane %v381, %v496
        %v498 = vmul.f32 %v484, %v493
        %v499 = vmul.f32 %v488, %v497
        %v500 = vadd.f32 %v480, %v498
        %v501 = vadd.f32 %v481, %v499
        %502 = vset.pattern.permute.xlu0 6
        %503 = vperm.xlu0 %502, %v357
        %v504 = vpop.permute.xlu0 %503
        %506 = vset.pattern.permute.xlu0 6
        %507 = vperm.xlu0 %506, %v358
        %v508 = vpop.permute.xlu0 %507
        %v510 = vlaneseq
        %v511 = vshrl.u32 %v510, 7
        %v512 = vsub.s32 6, %v511
        %v513 = vrot.slane %v380, %v512
        %v514 = vlaneseq
        %v515 = vshrl.u32 %v514, 7
        %v516 = vsub.s32 6, %v515
        %v517 = vrot.slane %v381, %v516
        %v518 = vmul.f32 %v504, %v513
        %v519 = vmul.f32 %v508, %v517
        %v520 = vadd.f32 %v500, %v518
        %v521 = vadd.f32 %v501, %v519
        %522 = vset.pattern.permute.xlu0 7
        %523 = vperm.xlu0 %522, %v357
        %v524 = vpop.permute.xlu0 %523
        %526 = vset.pattern.permute.xlu0 7
        %527 = vperm.xlu0 %526, %v358
        %v528 = vpop.permute.xlu0 %527
        %v530 = vlaneseq
        %v531 = vshrl.u32 %v530, 7
        %v532 = vsub.s32 7, %v531
        %v533 = vrot.slane %v380, %v532
        %v534 = vlaneseq
        %v535 = vshrl.u32 %v534, 7
        %v536 = vsub.s32 7, %v535
        %v537 = vrot.slane %v381, %v536
        %v538 = vmul.f32 %v524, %v533
        %v539 = vmul.f32 %v528, %v537
        %v540 = vadd.f32 %v520, %v538
        %v541 = vadd.f32 %v521, %v539
        %543 = vset.pattern.permute.xlu0 0
        %544 = vperm.xlu0 %543, %v361
        %v545 = vpop.permute.xlu0 %544
        %548 = vset.pattern.permute.xlu0 0
        %549 = vperm.xlu0 %548, %v362
        %v550 = vpop.permute.xlu0 %549
        %v552 = vmul.f32 %v545, %v540
        %v553 = vmul.f32 %v550, %v541
        %vm554 = vcmask 261120
        %v556 = vsel %vm554, %v552, 0
        %v559 = vsel %vm554, %v553, 0
        %561 = vmatprep.subr.mxu0 0.0
        %562 = vmatpush1.msra.mxu0 0.0
        %563 = vmatprep.subr.mxu0 0.0
        %564 = vmatpush1.msra.mxu0 0.0
        %565 = vmatprep.subr.mxu0 0.0
        %566 = vmatpush1.msra.mxu0 0.0
        %567 = vmatprep.subr.mxu0 0.0
        %568 = vmatpush1.msra.mxu0 0.0
        %569 = vmatprep.subr.mxu0 0.0
        %570 = vmatpush1.msra.mxu0 0.0
        %571 = vmatprep.subr.mxu0 0.0
        %572 = vmatpush1.msra.mxu0 0.0
        %573 = vmatprep.subr.mxu0 0.0
        %574 = vmatpush1.msra.mxu0 0.0
        %575 = vmatprep.subr.mxu0 0.0
        %576 = vmatpush1.msra.mxu0 0.0
        %577 = vmatprep.subr.mxu0 0.0
        %578 = vmatpush1.msra.mxu0 0.0
        %579 = vmatprep.subr.mxu0 0.0
        %580 = vmatpush1.msra.mxu0 0.0
        %581 = vmatprep.subr.mxu0 0.0
        %582 = vmatpush1.msra.mxu0 0.0
        %583 = vmatprep.subr.mxu0 0.0
        %584 = vmatpush1.msra.mxu0 0.0
        %585 = vmatprep.subr.mxu0 0.0
        %586 = vmatpush1.msra.mxu0 %v366
        %587 = vmatprep.subr.mxu0 0.0
        %588 = vmatpush1.msra.mxu0 %v365
        %589 = vmatprep.subr.mxu0 0.0
        %590 = vmatpush1.msra.mxu0 %v364
        %591 = vmatprep.subr.mxu0 0.0
        %592 = vmatpush1.msra.mxu0 %v363
        %593 = vmatprep.subr.mxu0 0.0
        %594 = vmatpush2.msra.mxu0 0.0
        %595 = vmatprep.subr.mxu0 0.0
        %596 = vmatpush2.msra.mxu0 0.0
        %597 = vmatprep.subr.mxu0 0.0
        %598 = vmatpush2.msra.mxu0 0.0
        %599 = vmatprep.subr.mxu0 0.0
        %600 = vmatpush2.msra.mxu0 0.0
        %601 = vmatprep.subr.mxu0 0.0
        %602 = vmatpush2.msra.mxu0 0.0
        %603 = vmatprep.subr.mxu0 0.0
        %604 = vmatpush2.msra.mxu0 0.0
        %605 = vmatprep.subr.mxu0 0.0
        %606 = vmatpush2.msra.mxu0 0.0
        %607 = vmatprep.subr.mxu0 0.0
        %608 = vmatpush2.msra.mxu0 0.0
        %609 = vmatprep.subr.mxu0 0.0
        %610 = vmatpush2.msra.mxu0 0.0
        %611 = vmatprep.subr.mxu0 0.0
        %612 = vmatpush2.msra.mxu0 0.0
        %613 = vmatprep.subr.mxu0 0.0
        %614 = vmatpush2.msra.mxu0 0.0
        %615 = vmatprep.subr.mxu0 0.0
        %616 = vmatpush2.msra.mxu0 0.0
        %617 = vmatprep.subr.mxu0 0.0
        %618 = vmatpush2.msra.mxu0 0.0
        %619 = vmatprep.subr.mxu0 0.0
        %620 = vmatpush2.msra.mxu0 0.0
        %621 = vmatprep.subr.mxu0 0.0
        %622 = vmatpush2.msra.mxu0 0.0
        %623 = vmatprep.subr.mxu0 0.0
        %624 = vmatpush2.msra.mxu0 0.0
        %625 = vmatprep.mubr.f32.mxu0 0.0
        %626 = vmatmul.mubr.f32.gmra.mxu0 %v556
        %v627 = vpop.f32.mrf.mxu0
        %v628 = vadd.f32 0.0, %v627
        %v629 = vpop.f32.mrf.mxu0
        %630 = vmatprep.mubr.f32.mxu0 0.0
        %631 = vmatmul.mubr.f32.gmra.mxu0 %v559
        %v632 = vpop.f32.mrf.mxu0
        %v633 = vadd.f32 0.0, %v632
        %v634 = vpop.f32.mrf.mxu0
        %635 = vdwg.mxu0
        %v637 = vlaneseq
        %v638 = vshrl.u32 %v637, 7
        %v639 = vsub.s32 0, %v638
        %v640 = vrot.slane %v367, %v639
        %v642 = vadd.f32 %v628, %v640
        %v643 = vadd.f32 %v633, %v640
        %644 = vst [vmem:[%s323] sm:$0xff] %v642
        %645 = vst [vmem:[%s323 + $0x8] sm:$0xff] %v643
        %s646 = sand.u32 %s192, 1
        %s647 = scalar_lea.sflag [#allocation3], %s646
        %s648 = sand.u32 %s192, 1
        %s649 = smul.addr %s648, 16
        %s650 = scalar_lea.vmem [#allocation2], %s649
        // Predicated region
        $region45: #{tpu_custom_call.1} parent=43 // pred_check
          %p651 = pneg %p202
        $region46: #{tpu_custom_call.1} parent=43 // pred_check_branch
          %653 = sbr.rel (%p651) target = $region48
        $region47: #{tpu_custom_call.1} parent=43 // pred_region
          %s654 = smul.u32 2, %s24
          %s656 = ssub.s32 256, 256
          %657 = vsyncadd %s647, %s656
          %s658 = sadd.s32 %s25, %s654
          %s659 = smul.addr %s658, 128
          %s660 = scalar_lea.hbm %s6, %s659
          %s661 = sshll.u32 %s650, 4
          %s662 = int_to_ptr.vmem [resolvable:$true] %s661
          %667 = dma.vmem_to_hbm [thread:$0]  %s662, 256, %s660, %s647, 128, 128, 8
        $region48: #{tpu_custom_call.1} parent=43 // pred_fallthru
          _
      $region44: #{tpu_custom_call.1} parent=5 // pred_fallthru
        _
      %p668 = scmp.le.s32.totalorder 2, %s15
      // Predicated region
      $region49: #{tpu_custom_call.1} parent=5 // pred_check
        %p669 = pneg %p668
      $region50: #{tpu_custom_call.1} parent=5 // pred_check_branch
        %671 = sbr.rel (%p669) target = $region52
      $region51: #{tpu_custom_call.1} parent=5 // pred_region
        %s672 = ssub.s32 %s15, 2
        // Predicated region
        $region53: #{tpu_custom_call.1} parent=51 // pred_check
          %p673 = pneg %p208
        $region54: #{tpu_custom_call.1} parent=51 // pred_check_branch
          %675 = sbr.rel (%p673) target = $region56
        $region55: #{tpu_custom_call.1} parent=51 // pred_region
          %s676 = sand.u32 %s193, 1
          %s677 = scalar_lea.sflag [#allocation3], %s676
          %s678 = sand.u32 %s193, 1
          %s679 = smul.addr %s678, 16
          %s680 = scalar_lea.vmem [#allocation2], %s679
          %681 = dma.done %s677, 256
        $region56: #{tpu_custom_call.1} parent=51 // pred_fallthru
          _
      $region52: #{tpu_custom_call.1} parent=5 // pred_fallthru
        _
    $region6: #{tpu_custom_call.1} parent=1 // loop_footer
      %s19 = sadd.s32 1, %s15
    $region7: #{tpu_custom_call.1} parent=1 // loop_footer_branch
      %14 = sbr.rel target = $region3
    $region8: #{tpu_custom_call.1} parent=1 // loop_exit
      _
    %682 = vsyncpa [#allocation3], 1
    %s683 = scalar_lea.sflag [#allocation3], 1
    %684 = vsyncpa %s683, 1

</llo_original>
